<compile_context>
chip_gen: v5e
topology: v5e:2x2
jax: 0.10.0
libtpu: 0.0.40
codegen_flags: <defaults>
</compile_context>

<pallas_src>
import functools

import jax
import jax.numpy as jnp
from jax.experimental import pallas as pl
from jax.experimental.pallas import tpu as pltpu


def _round_up(x, m):
    return (x + m - 1) // m * m


def _sublane_pack(dtype):
    # sublanes per vreg tile: 8 for 32-bit, 16 for 16-bit, 32 for 8-bit dtypes
    return {4: 8, 2: 16, 1: 32}.get(jnp.dtype(dtype).itemsize, 8)


def _unembed_kernel(x_ref, w_ref, b_ref, o_ref, xn_ref, *, eps, d_true, d_pad):
    """One (row-tile i, vocab-column-tile j) grid step.

    x_ref  : (tm, Dp)  raw embeddings (block index constant over j -> no re-DMA)
    w_ref  : (Dp, tv)  gamma-folded projection weights (streamed over j)
    b_ref  : (1,  tv)  beta-folded biases (f32)
    o_ref  : (tm, tv)  logits
    xn_ref : (tm, Dp)  VMEM scratch: normalized rows, written once at j == 0
    """
    @pl.when(pl.program_id(1) == 0)
    def _():
        x = x_ref[...].astype(jnp.float32)
        inv_d = 1.0 / d_true
        mean = jnp.sum(x, axis=-1, keepdims=True) * inv_d
        xc = x - mean
        if d_true != d_pad:
            # Zero the padded feature columns so variance and the matmul input
            # only see the true D features (mean already correct: pads are 0).
            col = jax.lax.broadcasted_iota(jnp.int32, x.shape, 1)
            xc = jnp.where(col < d_true, xc, 0.0)
        var = jnp.sum(xc * xc, axis=-1, keepdims=True) * inv_d
        xn_ref[...] = (xc * jax.lax.rsqrt(var + eps)).astype(xn_ref.dtype)

    y = jnp.dot(xn_ref[...], w_ref[...], preferred_element_type=jnp.float32)
    o_ref[...] = (y + b_ref[...].astype(jnp.float32)).astype(o_ref.dtype)


def mxl_unembeddings_forward(x, gamma, beta, w_cat, b_cat, vocab_sizes, *,
                             eps=1e-5, tile_rows=512, tile_cols=1024,
                             weight_dtype=jnp.bfloat16,
                             out_dtype=jnp.bfloat16,
                             return_concatenated=False):
    """x: (B, N, D); w_cat: (D, V_total); b_cat: (V_total,).

    Returns a dict of (B, N, V_k) arrays (same order as vocab_sizes), or, with
    return_concatenated=True, the raw padded (Mp, Vp) logits slab plus a
    {name: (offset, size)} dict (valid rows are the first B*N).
    """
    B, N, D = x.shape
    V = w_cat.shape[1]
    assert w_cat.shape == (D, V) and b_cat.shape == (V,)
    assert gamma.shape == (D,) and beta.shape == (D,)
    M = B * N

    # --- fold the LayerNorm affine into the projection (once, in f32) ---------
    #   ((x-m)*inv*gamma + beta) @ W + b == ((x-m)*inv) @ (gamma[:,None]*W)
    #                                        + (beta @ W + b)
    w_f32 = w_cat.astype(jnp.float32)
    w_fold = gamma.astype(jnp.float32)[:, None] * w_f32
    b_fold = beta.astype(jnp.float32) @ w_f32 + b_cat.astype(jnp.float32)

    # --- lane-dense padding of feature / vocab axes ---------------------------
    Dp = _round_up(D, 128)
    Vp = _round_up(V, 128)

    # --- generation-aware VMEM budget -----------------------------------------
    try:
        vmem_cap = int(getattr(pltpu.get_tpu_info(), "vmem_capacity_bytes",
                               64 << 20))
    except Exception:                      # info unavailable: assume v7x 64 MiB
        vmem_cap = 64 << 20
    budget = vmem_cap * 3 // 4             # ~96 MiB on v5e/v6e, ~48 MiB on v7x

    x_bytes = jnp.dtype(x.dtype).itemsize
    w_bytes = jnp.dtype(weight_dtype).itemsize
    out_bytes = jnp.dtype(out_dtype).itemsize
    sub = max(_sublane_pack(x.dtype), _sublane_pack(weight_dtype),
              _sublane_pack(out_dtype))

    # --- tile selection --------------------------------------------------------
    tm = _round_up(min(max(tile_rows, sub), max(M, sub)), sub)
    if tm >= 256:
        tm = (tm // 256) * 256             # whole MXU passes on v6e/v7x
    if M <= tm and M >= 2 * sub:
        # keep >=2 row steps so both v7x TensorCores get work on mid-size M
        tm = _round_up(-(-M // 2), sub)
    tv = _round_up(min(max(tile_cols, 128), Vp), 128)

    def vmem_need(tm_, tv_):
        return (2 * tm_ * Dp * x_bytes        # x row tiles (double-buffered)
                + tm_ * Dp * w_bytes          # normalized-rows scratch
                + 2 * Dp * tv_ * w_bytes      # streamed weight column tiles
                + 2 * tv_ * 4                 # bias column tiles (f32)
                + 2 * tm_ * tv_ * out_bytes)  # output tiles (double-buffered)

    while vmem_need(tm, tv) > budget and tv > 128:
        tv = max(128, _round_up(tv // 2, 128))
    while vmem_need(tm, tv) > budget and tm > sub:
        tm = max(sub, _round_up(tm // 2, sub))

    # balance column tiles so the grid divides exactly with minimal padding
    n_j = -(-Vp // tv)
    tv = _round_up(-(-Vp // n_j), 128)
    Vpad = n_j * tv
    Mp = _round_up(M, tm)

    vmem_limit = int(min(vmem_cap, max(vmem_need(tm, tv) + (8 << 20), 32 << 20)))

    # --- pad operands ----------------------------------------------------------
    x2 = x.reshape(M, D)
    if Mp != M or Dp != D:
        x2 = jnp.pad(x2, ((0, Mp - M), (0, Dp - D)))   # zero rows -> out = bias
    w2 = w_fold
    if Dp != D or Vpad != V:
        w2 = jnp.pad(w2, ((0, Dp - D), (0, Vpad - V)))
    b2 = b_fold if Vpad == V else jnp.pad(b_fold, (0, Vpad - V))
    # NOTE: on v7x, weight_dtype=jnp.float8_e4m3fn halves weight DMA/VMEM at
    # full MXU rate; validate logit accuracy before enabling.
    w2 = w2.astype(weight_dtype)
    b2 = b2.reshape(1, Vpad).astype(jnp.float32)

    kernel = functools.partial(_unembed_kernel, eps=float(eps), d_true=D,
                               d_pad=Dp)
    out = pl.pallas_call(
        kernel,
        out_shape=jax.ShapeDtypeStruct((Mp, Vpad), out_dtype),
        grid_spec=pltpu.PrefetchScalarGridSpec(
            num_scalar_prefetch=0,
            grid=(Mp // tm, Vpad // tv),
            in_specs=[
                pl.BlockSpec((tm, Dp), lambda i, j: (i, 0)),  # x rows (const in j)
                pl.BlockSpec((Dp, tv), lambda i, j: (0, j)),  # folded W (streamed)
                pl.BlockSpec((1, tv), lambda i, j: (0, j)),   # folded bias
            ],
            out_specs=pl.BlockSpec((tm, tv), lambda i, j: (i, j)),
            scratch_shapes=[pltpu.VMEM((tm, Dp), weight_dtype)],
        ),
        compiler_params=pltpu.CompilerParams(
            # Row axis is "parallel" (megacore / v7x 2-TC sharding).  The vocab
            # column axis carries the LN scratch across j, so it must stay
            # "arbitrary" (a core-split starting at j > 0 would skip the LN).
            dimension_semantics=("parallel", "arbitrary"),
            vmem_limit_bytes=vmem_limit),
    )(x2, w2, b2)

    offsets = {}
    off = 0
    for name, vs in vocab_sizes:
        offsets[name] = (off, vs)
        off += vs

    if return_concatenated:
        # Avoids re-reading the slab once per stream; valid rows are the first
        # B*N, valid columns the first V_total.
        return out, offsets

    outputs = {}
    for name, vs in vocab_sizes:
        o = offsets[name][0]
        outputs[name] = out[:M, o:o + vs].reshape(B, N, vs)
    return outputs


def reference_forward(x, gamma, beta, weights, biases, vocab_sizes, eps):
    x = x.astype(jnp.float32)
    mean = jnp.mean(x, axis=-1, keepdims=True)
    var = jnp.mean((x - mean) ** 2, axis=-1, keepdims=True)
    xn = (x - mean) * jax.lax.rsqrt(var + eps) * gamma + beta
    return {name: xn @ weights[name].T + biases[name] for name, _ in vocab_sizes}


if __name__ == "__main__":
    # Small, deterministic config (mirrors MXLUnembeddings.__init__ shapes).
    B, N, D = 2, 8, 32
    eps = 1e-5  # matches nn.LayerNorm default; pass config.layer_norm_eps in prod
    vocab_sizes = [
        ("offset", 9), ("downbeat", 3), ("duration", 11), ("pitch", 13),
        ("accidental", 5), ("keysignature", 7), ("velocity", 8), ("grace", 2),
        ("trill", 2), ("staccato", 2), ("voice", 4), ("stem", 3), ("hand", 2),
        ("pad", 1),  # mask_embeddings -> output_embeds['pad']
    ]

    key = jax.random.PRNGKey(0)
    keys = jax.random.split(key, 3 + 2 * len(vocab_sizes))

    x = jax.random.normal(keys[0], (B, N, D), dtype=jnp.float32)
    gamma = jax.random.normal(keys[1], (D,), dtype=jnp.float32) * 0.1 + 1.0
    beta = jax.random.normal(keys[2], (D,), dtype=jnp.float32) * 0.1

    # nn.Linear weights: (out_features, in_features), bias: (out_features,)
    weights, biases = {}, {}
    for i, (name, vs) in enumerate(vocab_sizes):
        kw, kb = keys[3 + 2 * i], keys[4 + 2 * i]
        bound = 1.0 / jnp.sqrt(D)
        weights[name] = jax.random.uniform(kw, (vs, D), jnp.float32, -bound, bound)
        biases[name] = jax.random.uniform(kb, (vs,), jnp.float32, -bound, bound)

    # Concatenate all projections along the vocab axis: (D, V_total).
    w_cat = jnp.concatenate([weights[n].T for n, _ in vocab_sizes], axis=1)
    b_cat = jnp.concatenate([biases[n] for n, _ in vocab_sizes], axis=0)

    ref = reference_forward(x, gamma, beta, weights, biases, vocab_sizes, eps)

    # 1) f32-weight / f32-out path: exact module semantics, tight tolerance.
    #    (M=16, tm=8 here -> exercises the multi-step "parallel" row axis.)
    outs_f32 = mxl_unembeddings_forward(
        x, gamma, beta, w_cat, b_cat, vocab_sizes, eps=eps,
        weight_dtype=jnp.float32, out_dtype=jnp.float32)
    outs_f32 = jax.tree_util.tree_map(jax.block_until_ready, outs_f32)
    for name, _ in vocab_sizes:
        assert outs_f32[name].shape == ref[name].shape, name
        err = jnp.max(jnp.abs(outs_f32[name] - ref[name]))
        assert err < 1e-4, ("f32", name, float(err))

    # 2) default bf16-MXU / bf16-out path on a shape that exercises row padding
    #    (M = 2*5 = 10 rows, padded to the 16-row tile inside the wrapper).
    #    TODO(synk): re-validate the bf16 tolerance at production D (error grows
    #    ~sqrt(D); accumulation is already f32).
    Ns = 5
    x_s = x[:, :Ns, :]
    outs_bf16 = mxl_unembeddings_forward(
        x_s, gamma, beta, w_cat, b_cat, vocab_sizes, eps=eps)
    outs_bf16 = jax.tree_util.tree_map(jax.block_until_ready, outs_bf16)
    for name, _ in vocab_sizes:
        ref_s = ref[name][:, :Ns]
        assert outs_bf16[name].shape == ref_s.shape, name
        err = jnp.max(jnp.abs(outs_bf16[name].astype(jnp.float32) - ref_s))
        assert err < 7.5e-2, ("bf16", name, float(err))

    # 3) concatenated-slab fast path (no 14x slab re-read): spot-check one stream.
    slab, offsets = mxl_unembeddings_forward(
        x, gamma, beta, w_cat, b_cat, vocab_sizes, eps=eps,
        return_concatenated=True)
    slab = jax.block_until_ready(slab)
    o, vs = offsets["pitch"]
    pitch = slab[:B * N, o:o + vs].reshape(B, N, vs).astype(jnp.float32)
    err = jnp.max(jnp.abs(pitch - ref["pitch"]))
    assert err < 7.5e-2, ("slab", float(err))

    print("KERNEL_OK")
</pallas_src>

<mosaic_0001>
module attributes {stable_mosaic.version = 11 : i64} {
  func.func @_unembed_kernel(%arg0: i32, %arg1: i32, %arg2: memref<8x128xf32, #tpu.memory_space<vmem>>, %arg3: memref<128x128xf32, #tpu.memory_space<vmem>>, %arg4: memref<1x128xf32, #tpu.memory_space<vmem>>, %arg5: memref<8x128xf32, #tpu.memory_space<vmem>>, %arg6: memref<8x128xf32, #tpu.memory_space<vmem>>) attributes {dimension_semantics = [#tpu.dimension_semantics<parallel>, #tpu.dimension_semantics<arbitrary>], iteration_bounds = array<i64: 2, 1>, scalar_prefetch = 0 : i64, scratch_operands = 1 : i64, tpu.core_type = #tpu.core_type<tc>, window_params = [{transform_indices = @transform_0, window_bounds = array<i64: 8, 128>}, {transform_indices = @transform_1, window_bounds = array<i64: 128, 128>}, {transform_indices = @transform_2, window_bounds = array<i64: 1, 128>}, {transform_indices = @transform_3, window_bounds = array<i64: 8, 128>}]} {
    %c0_i32 = arith.constant 0 : i32
    %0 = arith.cmpi eq, %arg1, %c0_i32 : i32
    %1 = arith.extui %0 : i1 to i32
    %c0_i32_0 = arith.constant 0 : i32
    %2 = arith.cmpi ne, %1, %c0_i32_0 : i32
    scf.if %2 {
      %c0_8 = arith.constant 0 : index
      %c0_9 = arith.constant 0 : index
      %10 = vector.load %arg2[%c0_8, %c0_9] : memref<8x128xf32, #tpu.memory_space<vmem>>, vector<8x128xf32>
      %cst_10 = arith.constant dense<0.000000e+00> : vector<8xf32>
      %11 = vector.multi_reduction <add>, %10, %cst_10 [1] : vector<8x128xf32> to vector<8xf32>
      %12 = vector.shape_cast %11 : vector<8xf32> to vector<8x1xf32>
      %cst_11 = arith.constant 3.125000e-02 : f32
      %13 = vector.broadcast %cst_11 : f32 to vector<8x1xf32>
      %14 = arith.mulf %12, %13 : vector<8x1xf32>
      %15 = vector.broadcast %14 : vector<8x1xf32> to vector<8x128xf32>
      %16 = arith.subf %10, %15 : vector<8x128xf32>
      %17 = tpu.iota {dimensions = array<i32: 1>} : vector<8x128xi32>
      %c32_i32 = arith.constant 32 : i32
      %18 = vector.broadcast %c32_i32 : i32 to vector<8x128xi32>
      %19 = arith.cmpi slt, %17, %18 : vector<8x128xi32>
      %cst_12 = arith.constant 0.000000e+00 : f32
      %20 = vector.broadcast %cst_12 : f32 to vector<8x128xf32>
      %21 = arith.select %19, %16, %20 : vector<8x128xi1>, vector<8x128xf32>
      %22 = arith.mulf %21, %21 : vector<8x128xf32>
      %cst_13 = arith.constant dense<0.000000e+00> : vector<8xf32>
      %23 = vector.multi_reduction <add>, %22, %cst_13 [1] : vector<8x128xf32> to vector<8xf32>
      %24 = vector.shape_cast %23 : vector<8xf32> to vector<8x1xf32>
      %cst_14 = arith.constant 3.125000e-02 : f32
      %25 = vector.broadcast %cst_14 : f32 to vector<8x1xf32>
      %26 = arith.mulf %24, %25 : vector<8x1xf32>
      %cst_15 = arith.constant 9.99999974E-6 : f32
      %27 = vector.broadcast %cst_15 : f32 to vector<8x1xf32>
      %28 = arith.addf %26, %27 : vector<8x1xf32>
      %29 = math.rsqrt %28 : vector<8x1xf32>
      %30 = vector.broadcast %29 : vector<8x1xf32> to vector<8x128xf32>
      %31 = arith.mulf %21, %30 : vector<8x128xf32>
      %c0_16 = arith.constant 0 : index
      %c0_17 = arith.constant 0 : index
      %32 = vector.load %arg6[%c0_16, %c0_17] : memref<8x128xf32, #tpu.memory_space<vmem>>, vector<8x128xf32>
      tpu.vector_store %arg6[%c0_16, %c0_17], %31 {strides = array<i32>} : memref<8x128xf32, #tpu.memory_space<vmem>>, vector<8x128xf32>,
    } else {
    }
    %c0 = arith.constant 0 : index
    %c0_1 = arith.constant 0 : index
    %3 = vector.load %arg6[%c0, %c0_1] : memref<8x128xf32, #tpu.memory_space<vmem>>, vector<8x128xf32>
    %c0_2 = arith.constant 0 : index
    %c0_3 = arith.constant 0 : index
    %4 = vector.load %arg3[%c0_2, %c0_3] : memref<128x128xf32, #tpu.memory_space<vmem>>, vector<128x128xf32>
    %cst = arith.constant dense<0.000000e+00> : vector<8x128xf32>
    %5 = tpu.matmul %3, %4, %cst {dimension_numbers = #tpu.dot_dimension_numbers<[1], [0], [0], [1], [0, 0, 1, 1], [], []>} : vector<8x128xf32>, vector<128x128xf32>, vector<8x128xf32> -> vector<8x128xf32>
    %c0_4 = arith.constant 0 : index
    %c0_5 = arith.constant 0 : index
    %6 = vector.load %arg4[%c0_4, %c0_5] : memref<1x128xf32, #tpu.memory_space<vmem>>, vector<1x128xf32>
    %7 = vector.broadcast %6 : vector<1x128xf32> to vector<8x128xf32>
    %8 = arith.addf %5, %7 : vector<8x128xf32>
    %c0_6 = arith.constant 0 : index
    %c0_7 = arith.constant 0 : index
    %9 = vector.load %arg5[%c0_6, %c0_7] : memref<8x128xf32, #tpu.memory_space<vmem>>, vector<8x128xf32>
    tpu.vector_store %arg5[%c0_6, %c0_7], %8 {strides = array<i32>} : memref<8x128xf32, #tpu.memory_space<vmem>>, vector<8x128xf32>,
    return
  }
  func.func @transform_0(%arg0: i32, %arg1: i32) -> (i32, i32) {
    %c0_i32 = arith.constant 0 : i32
    %c0_i32_0 = arith.constant 0 : i32
    return %arg0, %c0_i32 : i32, i32
  }
  func.func @transform_1(%arg0: i32, %arg1: i32) -> (i32, i32) {
    %c0_i32 = arith.constant 0 : i32
    %c0_i32_0 = arith.constant 0 : i32
    return %c0_i32, %arg1 : i32, i32
  }
  func.func @transform_2(%arg0: i32, %arg1: i32) -> (i32, i32) {
    %c0_i32 = arith.constant 0 : i32
    %c0_i32_0 = arith.constant 0 : i32
    return %c0_i32, %arg1 : i32, i32
  }
  func.func @transform_3(%arg0: i32, %arg1: i32) -> (i32, i32) {
    %c0_i32 = arith.constant 0 : i32
    return %arg0, %arg1 : i32, i32
  }
}

</mosaic_0001>

<llo_original>
// kernel: tpu_custom_call.1
$region0: #{tpu_custom_call.1}
  #allocation0 [shape = 'u32[]', space=smem, size = 0x4, offset = 0x4, fixed_abs, tag = 'smem constant byte address 0x4 - core index']
  #allocation1 [shape = 'u32[72,128]{1,0:T(1,128)}', space=vmem, size = 0x9000, scoped, tag = 'internal scratch']
  #allocation2 [shape = 'f32[8,128]{1,0:T(8,128)}', space=vmem, size = 0x1000, scoped, tag = 'scratch operand']
  %s0 = inlined_call_operand.hbm [shape: f32[16,128], index: 0, kind: input, shape index: {}]
  %s1 = inlined_call_operand.hbm [shape: f32[128,128], index: 1, kind: input, shape index: {}]
  %s2 = inlined_call_operand.vmem [shape: f32[1,128], index: 2, kind: input, shape index: {}]
  %s3 = inlined_call_operand.hbm [shape: f32[16,128], index: 3, kind: output, shape index: {}]
  %s4 = sld [smem:[#allocation0]]
  $region57: #{tpu_custom_call.1} parent=0
    _
  %s6 = ssub.s32 1, %s4
  %s7 = scalar_select 0, %s6, %s4
  $region1: #{tpu_custom_call.1} parent=0
    #allocation3 [shape = 'u8[8192]{0}', space=vmem, size = 0x2000, scoped, tag = 'input window, operand 0']
    #allocation4 [shape = 's32[2]{0}', space=sflag, size = 0x8, scoped, tag = 'scoped memory for tpu_custom_call.1']
    #allocation5 [shape = 's32[2]{0}', space=sflag, size = 0x8, scoped, tag = 'scoped memory for tpu_custom_call.1']
    #allocation6 [shape = 'u8[65536]{0}', space=vmem, size = 0x10000, scoped, tag = 'input window, operand 1, single buffered']
    #allocation7 [shape = 's32[1]{0}', space=sflag, size = 0x4, scoped, tag = 'scoped memory for tpu_custom_call.1']
    #allocation8 [shape = 'u8[8192]{0}', space=vmem, size = 0x2000, scoped, tag = 'output window, operand 0']
    %8 = vsyncpa [#allocation4], 0
    %s9 = scalar_lea.sflag [#allocation4], 1
    %10 = vsyncpa %s9, 0
    %11 = vsyncpa [#allocation7], 0
    %12 = vsyncpa [#allocation5], 0
    %s13 = scalar_lea.sflag [#allocation5], 1
    %14 = vsyncpa %s13, 0
    loop: start=0, step=1, limit=4
    $region2: #{tpu_custom_call.1} parent=1 // loop_pre_header
      _
    $region3: #{tpu_custom_call.1} parent=1 // loop_header
      %s16 = sphi 0, %s20
      %p17 = scmp.ge.s32.totalorder %s16, 4
      %s23 = sphi 0, %s35
      %s24 = sphi 0, %s31
      %s25 = sphi 0, %s23
      %s26 = sphi 0, %s24
      %s27 = sphi 0, %s25
      %s28 = sphi 0, %s26
      %s38 = sphi 0, %s40
      %s41 = sphi 0, %s38
      %s42 = sphi 0, %s41
      %s58 = sphi 0, %s42
      %s64 = sphi 0, %s66
      %s67 = sphi 0, %s64
      %s68 = sphi 0, %s67
      %s84 = sphi 0, %s68
      %s90 = sphi 0, %s92
      %s93 = sphi 0, %s90
      %s94 = sphi 0, %s93
      %s110 = sphi 0, %s94
      %s118 = sphi 0, %s120
      %s121 = sphi 0, %s118
      %s122 = sphi 0, %s121
      %s138 = sphi 0, %s122
    $region4: #{tpu_custom_call.1} parent=1 // loop_header_branch
      %19 = sbr.rel (%p17) target = $region8
    $region5: #{tpu_custom_call.1} parent=1 // loop_body
      %s21 = ssub.s32 %s16, 1
      %s22 = ssub.s32 %s16, 2
      %s29 = sadd.s32 1, %s24
      %p30 = scmp.ge.s32.totalorder %s29, 1
      %s31 = scalar_select %p30, 0, %s29
      %s32 = sadd.s32 1, %s23
      %s33 = scalar_select %p30, %s32, %s23
      %p34 = scmp.ge.s32.totalorder %s33, 2
      %s35 = scalar_select %p34, 0, %s33
      %s36 = ssub.s32 %s23, %s35
      %p37 = scmp.eq.s32.totalorder %s36, 0
      %s39 = sadd.s32 %s38, 1
      %s40 = scalar_select %p37, %s38, %s39
      %p43 = pneg %p37
      %p44 = scmp.eq.s32.totalorder %s16, 1
      %p45 = por %p43, %p44
      %p46 = scmp.ne.s32.totalorder %s38, %s41
      %p47 = scmp.eq.s32.totalorder %s16, 0
      %p48 = por %p46, %p47
      %p49 = scmp.ne.s32.totalorder %s38, %s41
      %p50 = scmp.eq.s32.totalorder %s21, 1
      %p51 = por %p49, %p50
      %p52 = scmp.ne.s32.totalorder %s41, %s42
      %p53 = scmp.eq.s32.totalorder %s21, 0
      %p54 = por %p52, %p53
      %p55 = scmp.ne.s32.totalorder %s41, %s42
      %p56 = scmp.eq.s32.totalorder %s22, 1
      %p57 = por %p55, %p56
      %p59 = scmp.ne.s32.totalorder %s42, %s58
      %p60 = scmp.eq.s32.totalorder %s22, 0
      %p61 = por %p59, %p60
      %s62 = ssub.s32 %s24, %s31
      %p63 = scmp.eq.s32.totalorder %s62, 0
      %s65 = sadd.s32 %s64, 1
      %s66 = scalar_select %p63, %s64, %s65
      %p69 = pneg %p63
      %p70 = scmp.eq.s32.totalorder %s16, 1
      %p71 = por %p69, %p70
      %p72 = scmp.ne.s32.totalorder %s64, %s67
      %p73 = scmp.eq.s32.totalorder %s16, 0
      %p74 = por %p72, %p73
      %p75 = scmp.ne.s32.totalorder %s64, %s67
      %p76 = scmp.eq.s32.totalorder %s21, 1
      %p77 = por %p75, %p76
      %p78 = scmp.ne.s32.totalorder %s67, %s68
      %p79 = scmp.eq.s32.totalorder %s21, 0
      %p80 = por %p78, %p79
      %p81 = scmp.ne.s32.totalorder %s67, %s68
      %p82 = scmp.eq.s32.totalorder %s22, 1
      %p83 = por %p81, %p82
      %p85 = scmp.ne.s32.totalorder %s68, %s84
      %p86 = scmp.eq.s32.totalorder %s22, 0
      %p87 = por %p85, %p86
      %s88 = ssub.s32 %s24, %s31
      %p89 = scmp.eq.s32.totalorder %s88, 0
      %s91 = sadd.s32 %s90, 1
      %s92 = scalar_select %p89, %s90, %s91
      %p95 = pneg %p89
      %p96 = scmp.eq.s32.totalorder %s16, 1
      %p97 = por %p95, %p96
      %p98 = scmp.ne.s32.totalorder %s90, %s93
      %p99 = scmp.eq.s32.totalorder %s16, 0
      %p100 = por %p98, %p99
      %p101 = scmp.ne.s32.totalorder %s90, %s93
      %p102 = scmp.eq.s32.totalorder %s21, 1
      %p103 = por %p101, %p102
      %p104 = scmp.ne.s32.totalorder %s93, %s94
      %p105 = scmp.eq.s32.totalorder %s21, 0
      %p106 = por %p104, %p105
      %p107 = scmp.ne.s32.totalorder %s93, %s94
      %p108 = scmp.eq.s32.totalorder %s22, 1
      %p109 = por %p107, %p108
      %p111 = scmp.ne.s32.totalorder %s94, %s110
      %p112 = scmp.eq.s32.totalorder %s22, 0
      %p113 = por %p111, %p112
      %s114 = ssub.s32 %s23, %s35
      %s115 = ssub.s32 %s24, %s31
      %s116 = sor.u32 %s114, %s115
      %p117 = scmp.eq.s32.totalorder %s116, 0
      %s119 = sadd.s32 %s118, 1
      %s120 = scalar_select %p117, %s118, %s119
      %p123 = pneg %p117
      %p124 = scmp.eq.s32.totalorder %s16, 1
      %p125 = por %p123, %p124
      %p126 = scmp.ne.s32.totalorder %s118, %s121
      %p127 = scmp.eq.s32.totalorder %s16, 0
      %p128 = por %p126, %p127
      %p129 = scmp.ne.s32.totalorder %s118, %s121
      %p130 = scmp.eq.s32.totalorder %s21, 1
      %p131 = por %p129, %p130
      %p132 = scmp.ne.s32.totalorder %s121, %s122
      %p133 = scmp.eq.s32.totalorder %s21, 0
      %p134 = por %p132, %p133
      %p135 = scmp.ne.s32.totalorder %s121, %s122
      %p136 = scmp.eq.s32.totalorder %s22, 1
      %p137 = por %p135, %p136
      %p139 = scmp.ne.s32.totalorder %s122, %s138
      %p140 = scmp.eq.s32.totalorder %s22, 0
      %p141 = por %p139, %p140
      %p142 = scmp.le.s32.totalorder 1, %s16
      %p143 = scmp.lt.s32.totalorder %s16, 3
      %p144 = pnand %p142, %p143
      %p145 = pneg %p144
      // Predicated region
      $region9: #{tpu_custom_call.1} parent=5 // pred_check
        _
      $region10: #{tpu_custom_call.1} parent=5 // pred_check_branch
        %147 = sbr.rel (%p144) target = $region12
      $region11: #{tpu_custom_call.1} parent=5 // pred_region
        %s148 = ssub.s32 %s16, 1
        // Predicated region
        $region13: #{tpu_custom_call.1} parent=11 // pred_check
          %p149 = pneg %p80
        $region14: #{tpu_custom_call.1} parent=11 // pred_check_branch
          %151 = sbr.rel (%p149) target = $region16
        $region15: #{tpu_custom_call.1} parent=11 // pred_region
          %153 = vsyncadd [#allocation7], 0
          %s154 = smul.addr %s26, 8
          %s155 = scalar_lea.hbm %s1, %s154
          %s156 = sshll.u32 %s155, 4
          %s157 = int_to_ptr.hbm [resolvable:$true] %s156
          %s158 = sshll.u32 [#allocation6], 4
          %s159 = int_to_ptr.vmem [resolvable:$true] %s158
          %164 = dma.hbm_to_vmem [thread:$0]  %s157, 2048, %s159, [#allocation7], 128, 128, 8
        $region16: #{tpu_custom_call.1} parent=11 // pred_fallthru
          _
        // Predicated region
        $region17: #{tpu_custom_call.1} parent=11 // pred_check
          %p165 = pneg %p106
        $region18: #{tpu_custom_call.1} parent=11 // pred_check_branch
          %167 = sbr.rel (%p165) target = $region20
        $region19: #{tpu_custom_call.1} parent=11 // pred_region
          %p168 = scmp.lt.s32.totalorder %s26, 0
          %s169 = scalar_select %p168, %s26, 0
          %s170 = scalar_lea.vmem %s2, %s169
        $region20: #{tpu_custom_call.1} parent=11 // pred_fallthru
          _
      $region12: #{tpu_custom_call.1} parent=5 // pred_fallthru
        _
      %p171 = scmp.lt.s32.totalorder %s16, 2
      // Predicated region
      $region21: #{tpu_custom_call.1} parent=5 // pred_check
        %p172 = pneg %p171
      $region22: #{tpu_custom_call.1} parent=5 // pred_check_branch
        %174 = sbr.rel (%p172) target = $region24
      $region23: #{tpu_custom_call.1} parent=5 // pred_region
        // Predicated region
        $region25: #{tpu_custom_call.1} parent=23 // pred_check
          %p175 = pneg %p48
        $region26: #{tpu_custom_call.1} parent=23 // pred_check_branch
          %177 = sbr.rel (%p175) target = $region28
        $region27: #{tpu_custom_call.1} parent=23 // pred_region
          %s178 = sand.u32 %s38, 1
          %s179 = scalar_lea.sflag [#allocation4], %s178
          %s180 = sand.u32 %s38, 1
          %s181 = smul.addr %s180, 8
          %s182 = scalar_lea.vmem [#allocation3], %s181
          %184 = vsyncadd %s179, 0
          %s185 = smul.addr %s23, 8
          %s186 = scalar_lea.hbm %s0, %s185
          %s188 = sshll.u32 %s186, 4
          %s189 = int_to_ptr.hbm [resolvable:$true] %s188
          %s190 = sshll.u32 %s182, 4
          %s191 = int_to_ptr.vmem [resolvable:$true] %s190
          %193 = dma.hbm_to_vmem [thread:$0]  %s189, 128, %s191, %s179
        $region28: #{tpu_custom_call.1} parent=23 // pred_fallthru
          _
      $region24: #{tpu_custom_call.1} parent=5 // pred_fallthru
        _
      %p194 = scmp.le.s32.totalorder 1, %s16
      %p195 = scmp.lt.s32.totalorder %s16, 3
      %p196 = pnand %p194, %p195
      %p197 = pneg %p196
      // Predicated region
      $region29: #{tpu_custom_call.1} parent=5 // pred_check
        _
      $region30: #{tpu_custom_call.1} parent=5 // pred_check_branch
        %199 = sbr.rel (%p196) target = $region32
      $region31: #{tpu_custom_call.1} parent=5 // pred_region
        %s200 = ssub.s32 %s16, 1
        %s201 = sand.u32 %s41, 1
        %s202 = scalar_lea.sflag [#allocation4], %s201
        %s203 = sand.u32 %s41, 1
        %s204 = smul.addr %s203, 8
        %s205 = scalar_lea.vmem [#allocation3], %s204
        // Predicated region
        $region33: #{tpu_custom_call.1} parent=31 // pred_check
          %p206 = pneg %p54
        $region34: #{tpu_custom_call.1} parent=31 // pred_check_branch
          %208 = sbr.rel (%p206) target = $region36
        $region35: #{tpu_custom_call.1} parent=31 // pred_region
          %210 = dma.done %s202, 128
        $region36: #{tpu_custom_call.1} parent=31 // pred_fallthru
          _
        // Predicated region
        $region37: #{tpu_custom_call.1} parent=31 // pred_check
          %p211 = pneg %p80
        $region38: #{tpu_custom_call.1} parent=31 // pred_check_branch
          %213 = sbr.rel (%p211) target = $region40
        $region39: #{tpu_custom_call.1} parent=31 // pred_region
          %215 = dma.done [#allocation7], 2048
        $region40: #{tpu_custom_call.1} parent=31 // pred_fallthru
          _
        %s216 = sand.u32 %s41, 1
        %s217 = scalar_lea.sflag [#allocation4], %s216
        %s218 = sand.u32 %s41, 1
        %s219 = smul.addr %s218, 8
        %s220 = scalar_lea.vmem [#allocation3], %s219
        %p221 = pneg %p54
        %p222 = pneg %p51
        %p223 = pneg %p80
        %p224 = pneg %p77
        %p225 = scmp.lt.s32.totalorder %s26, 0
        %s226 = scalar_select %p225, %s26, 0
        %s227 = scalar_lea.vmem %s2, %s226
        %p228 = pneg %p106
        %p229 = pneg %p103
        %p230 = pneg %p134
        %p231 = pneg %p131
        %s232 = sand.u32 %s121, 1
        %s233 = scalar_lea.sflag [#allocation5], %s232
        %s234 = sand.u32 %s121, 1
        %s235 = smul.addr %s234, 8
        %s236 = scalar_lea.vmem [#allocation8], %s235
        %p237 = scmp.lt.s32.totalorder %s26, 0
        %s238 = scalar_select %p237, %s26, 0
        %s239 = scalar_lea.vmem %s2, %s238
        %p240 = scmp.eq.s32.totalorder %s26, 0
        // Predicated region
        $region41: #{tpu_custom_call.1} parent=31 // pred_check
          %p241 = pneg %p240
        $region42: #{tpu_custom_call.1} parent=31 // pred_check_branch
          %243 = sbr.rel (%p241) target = $region44
        $region43: #{tpu_custom_call.1} parent=31 // pred_region
          %v244 = vld [vmem:[%s205] sm:$0xff]
          %245 = vadd.xlane.f32.xlu0 %v244
          %v246 = vpop.xlane.xlu0 %245
          %v247 = vmul.f32 %v246, 0.03125
          %v248 = vsub.f32 %v244, %v247
          %v249 = vlaneseq
          %v250 = vand.u32 %v249, 127
          %vm251 = vcmp.lt.s32.totalorder %v250, 32
          %v252 = vsel %vm251, %v248, 0.0
          %v253 = vmul.f32 %v252, %v252
          %254 = vadd.xlane.f32.xlu0 %v253
          %v255 = vpop.xlane.xlu0 %254
          %v256 = vmul.f32 %v255, 0.03125
          %v257 = vadd.f32 %v256, 1e-05
          %v258 = vrsqrt.pop %v257
          %v259 = vmul.f32 %v258, %v257
          %v260 = vmul.f32 %v259, %v258
          %v261 = vmul.f32 0.5, %v260
          %v262 = vsub.f32 1.5, %v261
          %v263 = vmul.f32 %v258, %v262
          %vm264 = vweird.f32 %v257
          %vm265 = vweird.f32 %v258
          %vm266 = vmor %vm264, %vm265
          %v267 = vsel %vm266, %v258, %v263
          %v268 = vmul.f32 %v252, %v267
          %269 = vst [vmem:[#allocation2] sm:$0xff] %v268
        $region44: #{tpu_custom_call.1} parent=31 // pred_fallthru
          _
        %v270 = vld [vmem:[#allocation2] sm:$0xff]
        %v271 = vld [vmem:[#allocation6] sm:$0xff]
        %v272 = vld [vmem:[#allocation6 + $0x8] sm:$0xff]
        %v273 = vld [vmem:[#allocation6 + $0x10] sm:$0xff]
        %v274 = vld [vmem:[#allocation6 + $0x18] sm:$0xff]
        %v275 = vld [vmem:[#allocation6 + $0x20] sm:$0xff]
        %v276 = vld [vmem:[#allocation6 + $0x28] sm:$0xff]
        %v277 = vld [vmem:[#allocation6 + $0x30] sm:$0xff]
        %v278 = vld [vmem:[#allocation6 + $0x38] sm:$0xff]
        %v279 = vld [vmem:[#allocation6 + $0x40] sm:$0xff]
        %v280 = vld [vmem:[#allocation6 + $0x48] sm:$0xff]
        %v281 = vld [vmem:[#allocation6 + $0x50] sm:$0xff]
        %v282 = vld [vmem:[#allocation6 + $0x58] sm:$0xff]
        %v283 = vld [vmem:[#allocation6 + $0x60] sm:$0xff]
        %v284 = vld [vmem:[#allocation6 + $0x68] sm:$0xff]
        %v285 = vld [vmem:[#allocation6 + $0x70] sm:$0xff]
        %v286 = vld [vmem:[#allocation6 + $0x78] sm:$0xff]
        %v287 = vld [vmem:[%s239] sm:$0x1]
        %v289 = vperm.slane %v287, 0
        %291 = vmatpush.msra.mxu0 %v286
        %292 = vmatpush.msra.mxu0 %v285
        %293 = vmatpush.msra.mxu0 %v284
        %294 = vmatpush.msra.mxu0 %v283
        %295 = vmatpush.msra.mxu0 %v282
        %296 = vmatpush.msra.mxu0 %v281
        %297 = vmatpush.msra.mxu0 %v280
        %298 = vmatpush.msra.mxu0 %v279
        %299 = vmatpush.msra.mxu0 %v278
        %300 = vmatpush.msra.mxu0 %v277
        %301 = vmatpush.msra.mxu0 %v276
        %302 = vmatpush.msra.mxu0 %v275
        %303 = vmatpush.msra.mxu0 %v274
        %304 = vmatpush.msra.mxu0 %v273
        %305 = vmatpush.msra.mxu0 %v272
        %306 = vmatpush.msra.mxu0 %v271
        %307 = vmatmul.f32.gmra.mxu0 %v270
        %v308 = vpop.f32.mrf.mxu0
        %v309 = vadd.f32 %v289, %v308
        %310 = vdwg.mxu0
        %311 = vst [vmem:[%s236] sm:$0xff] %v309
        %s312 = sand.u32 %s121, 1
        %s313 = scalar_lea.sflag [#allocation5], %s312
        %s314 = sand.u32 %s121, 1
        %s315 = smul.addr %s314, 8
        %s316 = scalar_lea.vmem [#allocation8], %s315
        // Predicated region
        $region45: #{tpu_custom_call.1} parent=31 // pred_check
          %p317 = pneg %p131
        $region46: #{tpu_custom_call.1} parent=31 // pred_check_branch
          %319 = sbr.rel (%p317) target = $region48
        $region47: #{tpu_custom_call.1} parent=31 // pred_region
          %321 = vsyncadd %s313, 0
          %s322 = sadd.s32 %s26, %s25
          %s323 = smul.addr %s322, 8
          %s324 = scalar_lea.hbm %s3, %s323
          %s326 = sshll.u32 %s316, 4
          %s327 = int_to_ptr.vmem [resolvable:$true] %s326
          %s328 = sshll.u32 %s324, 4
          %s329 = int_to_ptr.hbm [resolvable:$true] %s328
          %331 = dma.vmem_to_hbm [thread:$0]  %s327, 128, %s329, %s313
        $region48: #{tpu_custom_call.1} parent=31 // pred_fallthru
          _
      $region32: #{tpu_custom_call.1} parent=5 // pred_fallthru
        _
      %p332 = scmp.le.s32.totalorder 2, %s16
      // Predicated region
      $region49: #{tpu_custom_call.1} parent=5 // pred_check
        %p333 = pneg %p332
      $region50: #{tpu_custom_call.1} parent=5 // pred_check_branch
        %335 = sbr.rel (%p333) target = $region52
      $region51: #{tpu_custom_call.1} parent=5 // pred_region
        %s336 = ssub.s32 %s16, 2
        // Predicated region
        $region53: #{tpu_custom_call.1} parent=51 // pred_check
          %p337 = pneg %p137
        $region54: #{tpu_custom_call.1} parent=51 // pred_check_branch
          %339 = sbr.rel (%p337) target = $region56
        $region55: #{tpu_custom_call.1} parent=51 // pred_region
          %s340 = sand.u32 %s122, 1
          %s341 = scalar_lea.sflag [#allocation5], %s340
          %s342 = sand.u32 %s122, 1
          %s343 = smul.addr %s342, 8
          %s344 = scalar_lea.vmem [#allocation8], %s343
          %346 = dma.done %s341, 128
        $region56: #{tpu_custom_call.1} parent=51 // pred_fallthru
          _
      $region52: #{tpu_custom_call.1} parent=5 // pred_fallthru
        _
    $region6: #{tpu_custom_call.1} parent=1 // loop_footer
      %s20 = sadd.s32 1, %s16
    $region7: #{tpu_custom_call.1} parent=1 // loop_footer_branch
      %15 = sbr.rel target = $region3
    $region8: #{tpu_custom_call.1} parent=1 // loop_exit
      _
    %347 = vsyncpa [#allocation4], 1
    %s348 = scalar_lea.sflag [#allocation4], 1
    %349 = vsyncpa %s348, 1
    %350 = vsyncpa [#allocation7], 1
    %351 = vsyncpa [#allocation5], 1
    %s352 = scalar_lea.sflag [#allocation5], 1
    %353 = vsyncpa %s352, 1

</llo_original>
